<compile_context>
chip_gen: v7x
topology: tpu7x:2x2x1
jax: 0.10.0
libtpu: 0.0.40
codegen_flags: <defaults>
</compile_context>

<pallas_src>
import jax
import jax.numpy as jnp
from jax.experimental import pallas as pl
from jax.experimental.pallas import tpu as pltpu

# ----------------------------------------------------------- hyperparameters
P_HIDDEN = 32          # hyperparameters['p_hidden_dim']  (small synthetic BERT hidden)
POLICY_HIDDEN = 32     # hyperparameters['policy_hidden']
POLICY_HALF = POLICY_HIDDEN // 2
OUT_DIM = 2            # output_dim (defer / don't defer)
VOCAB_SIZE = 64
LANE = 128             # TPU lane width; every feature dim is zero-padded to this
MAX_BATCH_TILE = 512   # rows per grid step (sublane-aligned)


# -------------------------------------------------------------------- kernel
def deferral_kernel(ids_ref, emb_ref, w_ref, b_ref, out_ref):
    tb = ids_ref.shape[0]

    # --- defer_layer stand-in: CLS-token embedding lookup via one-hot matmul ---
    # TODO(synk): the pretrained transformer encoder (AutoModel) has no compact
    # Pallas equivalent; only the embedding lookup + BERT pooler (dense + tanh)
    # are modeled here.
    ids = ids_ref[...]                                                  # [tb, 1] i32
    onehot = (jax.lax.broadcasted_iota(jnp.int32, (tb, VOCAB_SIZE), 1)
              == ids).astype(jnp.float32)                               # [tb, V]
    cls = jnp.dot(onehot, emb_ref[...],
                  preferred_element_type=jnp.float32)                   # [tb, 128]

    # BERT pooler: pooled = tanh(dense(CLS));  dropout -> identity (eval mode).
    pooled = jnp.tanh(
        jnp.dot(cls, w_ref[:, 0:LANE], preferred_element_type=jnp.float32)
        + b_ref[:, 0:LANE])

    # fc1: Linear -> ReLU -> Dropout(id)
    h1 = jnp.maximum(
        jnp.dot(pooled, w_ref[:, LANE:2 * LANE],
                preferred_element_type=jnp.float32)
        + b_ref[:, LANE:2 * LANE], 0.0)

    # fc2: Linear -> ReLU -> Dropout(id) -> Linear
    h2 = jnp.maximum(
        jnp.dot(h1, w_ref[:, 2 * LANE:3 * LANE],
                preferred_element_type=jnp.float32)
        + b_ref[:, 2 * LANE:3 * LANE], 0.0)
    out = (jnp.dot(h2, w_ref[:, 3 * LANE:4 * LANE],
                   preferred_element_type=jnp.float32)
           + b_ref[:, 3 * LANE:4 * LANE])                               # [tb, 128]

    # Lane-dense unmasked store; real logits are columns 0..OUT_DIM-1, the rest
    # are exact zeros (zero-padded weights / biases).
    out_ref[...] = out


# ------------------------------------------------------------------- wrapper
def _batch_tile(b):
    """Sublane-aligned batch tile; >= 2 grid steps when the batch allows (v7x)."""
    b_pad8 = 8 * pl.cdiv(b, 8)
    if b_pad8 <= 8:
        return 8
    half = 8 * pl.cdiv(b_pad8 // 2, 8)
    return min(MAX_BATCH_TILE, max(8, half))


@jax.jit
def deferral_forward(x1, x2, attention_mask, packed):
    """x1: [B, L] int32 token ids. x2 / attention_mask kept for API parity."""
    del x2                      # unused by the reference forward as well
    del attention_mask          # TODO(synk): mask unused by the CLS stand-in
    cls_ids = x1[:, 0].astype(jnp.int32)                                # [B]
    B = cls_ids.shape[0]

    tile = _batch_tile(B)
    B_pad = tile * pl.cdiv(B, tile)
    ids = jnp.zeros((B_pad, 1), jnp.int32).at[:B, 0].set(cls_ids)

    out_pad = pl.pallas_call(
        deferral_kernel,
        out_shape=jax.ShapeDtypeStruct((B_pad, LANE), jnp.float32),
        grid_spec=pltpu.PrefetchScalarGridSpec(
            num_scalar_prefetch=0,
            grid=(B_pad // tile,),
            in_specs=[
                pl.BlockSpec((tile, 1), lambda i: (i, 0)),              # CLS ids
                pl.BlockSpec((VOCAB_SIZE, LANE), lambda i: (0, 0)),     # embed
                pl.BlockSpec((LANE, 4 * LANE), lambda i: (0, 0)),       # packed W
                pl.BlockSpec((1, 4 * LANE), lambda i: (0, 0)),          # packed b
            ],
            out_specs=pl.BlockSpec((tile, LANE), lambda i: (i, 0)),
        ),
        compiler_params=pltpu.CompilerParams(
            dimension_semantics=("parallel",)),
    )(ids, packed["emb_pad"], packed["w_all"], packed["b_all"])

    return out_pad[:B, :OUT_DIM]


# ------------------------------------------------------------- param packing
def _pad_block(w):
    blk = jnp.zeros((LANE, LANE), jnp.float32)
    return blk.at[:w.shape[0], :w.shape[1]].set(w)


def _pad_bias(b):
    blk = jnp.zeros((1, LANE), jnp.float32)
    return blk.at[:, :b.shape[1]].set(b)


def pack_params(raw):
    emb_pad = jnp.zeros((VOCAB_SIZE, LANE), jnp.float32)
    emb_pad = emb_pad.at[:, :P_HIDDEN].set(raw["embed"])
    w_all = jnp.concatenate(
        [_pad_block(raw["wp"]), _pad_block(raw["w1"]),
         _pad_block(raw["w2a"]), _pad_block(raw["w2b"])], axis=1)       # [128, 512]
    b_all = jnp.concatenate(
        [_pad_bias(raw["bp"]), _pad_bias(raw["b1"]),
         _pad_bias(raw["b2a"]), _pad_bias(raw["b2b"])], axis=1)         # [1, 512]
    return {"emb_pad": emb_pad, "w_all": w_all, "b_all": b_all}


def init_params(key):
    ks = jax.random.split(key, 8)

    def lin(k, fan_in, fan_out):
        kw, kb = jax.random.split(k)
        w = jax.random.normal(kw, (fan_in, fan_out), jnp.float32) * 0.05
        b = jax.random.normal(kb, (1, fan_out), jnp.float32) * 0.01
        return w, b

    p = {}
    # Embedding table rounded to bf16-representable values so the in-kernel
    # one-hot-matmul gather is bit-exact with jnp.take regardless of MXU passes.
    emb = jax.random.normal(ks[0], (VOCAB_SIZE, P_HIDDEN), jnp.float32) * 0.05
    p["embed"] = emb.astype(jnp.bfloat16).astype(jnp.float32)
    p["wp"], p["bp"] = lin(ks[1], P_HIDDEN, P_HIDDEN)                 # BERT pooler
    p["w1"], p["b1"] = lin(ks[2], P_HIDDEN, POLICY_HIDDEN)            # fc1[0]
    p["w2a"], p["b2a"] = lin(ks[3], POLICY_HIDDEN, POLICY_HALF)       # fc2[0]
    p["w2b"], p["b2b"] = lin(ks[4], POLICY_HALF, OUT_DIM)             # fc2[3]
    return p


# ---------------------------------------------------------- pure-JAX reference
def deferral_reference(x1, params):
    cls = jnp.take(params["embed"], x1[:, 0], axis=0)                 # [B, H]
    pooled = jnp.tanh(cls @ params["wp"] + params["bp"])
    temp = jax.nn.relu(pooled @ params["w1"] + params["b1"])
    h = jax.nn.relu(temp @ params["w2a"] + params["b2a"])
    return h @ params["w2b"] + params["b2b"]


if __name__ == "__main__":
    key = jax.random.PRNGKey(0)
    k_ids, k_params = jax.random.split(key)

    B, SEQ_LEN = 2, 8
    x1 = jax.random.randint(k_ids, (B, SEQ_LEN), 0, VOCAB_SIZE, dtype=jnp.int32)
    x2 = jnp.zeros((B, SEQ_LEN), jnp.int32)              # unused by the forward
    attention_mask = jnp.ones((B, SEQ_LEN), jnp.int32)

    raw = init_params(k_params)
    packed = pack_params(raw)

    out = deferral_forward(x1, x2, attention_mask, packed)
    jax.block_until_ready(out)

    ref = deferral_reference(x1, raw)
    assert out.shape == (B, OUT_DIM)
    assert jnp.allclose(out, ref, atol=2e-5, rtol=2e-5)

    print("KERNEL_OK")
</pallas_src>

<mosaic_0001>
module attributes {stable_mosaic.version = 11 : i64} {
  func.func @deferral_kernel(%arg0: i32, %arg1: memref<8x1xi32, #tpu.memory_space<vmem>>, %arg2: memref<64x128xf32, #tpu.memory_space<vmem>>, %arg3: memref<128x512xf32, #tpu.memory_space<vmem>>, %arg4: memref<1x512xf32, #tpu.memory_space<vmem>>, %arg5: memref<8x128xf32, #tpu.memory_space<vmem>>) attributes {dimension_semantics = [#tpu.dimension_semantics<parallel>], iteration_bounds = array<i64: 1>, scalar_prefetch = 0 : i64, scratch_operands = 0 : i64, tpu.core_type = #tpu.core_type<tc>, window_params = [{transform_indices = @transform_0, window_bounds = array<i64: 8, 1>}, {pipeline_mode = #tpu.pipeline_mode<synchronous>, transform_indices = @transform_1, window_bounds = array<i64: 64, 128>}, {pipeline_mode = #tpu.pipeline_mode<synchronous>, transform_indices = @transform_2, window_bounds = array<i64: 128, 512>}, {pipeline_mode = #tpu.pipeline_mode<synchronous>, transform_indices = @transform_3, window_bounds = array<i64: 1, 512>}, {transform_indices = @transform_4, window_bounds = array<i64: 8, 128>}]} {
    %c0 = arith.constant 0 : index
    %c0_0 = arith.constant 0 : index
    %0 = vector.load %arg1[%c0, %c0_0] : memref<8x1xi32, #tpu.memory_space<vmem>>, vector<8x1xi32>
    %1 = tpu.iota {dimensions = array<i32: 1>} : vector<8x64xi32>
    %2 = vector.broadcast %0 : vector<8x1xi32> to vector<8x64xi32>
    %3 = arith.cmpi eq, %1, %2 : vector<8x64xi32>
    %4 = arith.extui %3 : vector<8x64xi1> to vector<8x64xi32>
    %5 = arith.sitofp %4 : vector<8x64xi32> to vector<8x64xf32>
    %c0_1 = arith.constant 0 : index
    %c0_2 = arith.constant 0 : index
    %6 = vector.load %arg2[%c0_1, %c0_2] : memref<64x128xf32, #tpu.memory_space<vmem>>, vector<64x128xf32>
    %cst = arith.constant dense<0.000000e+00> : vector<8x128xf32>
    %7 = tpu.matmul %5, %6, %cst {dimension_numbers = #tpu.dot_dimension_numbers<[1], [0], [0], [1], [0, 0, 1, 1], [], []>} : vector<8x64xf32>, vector<64x128xf32>, vector<8x128xf32> -> vector<8x128xf32>
    %c0_3 = arith.constant 0 : index
    %c0_4 = arith.constant 0 : index
    %8 = vector.load %arg3[%c0_3, %c0_4] : memref<128x512xf32, #tpu.memory_space<vmem>>, vector<128x128xf32>
    %cst_5 = arith.constant dense<0.000000e+00> : vector<8x128xf32>
    %9 = tpu.matmul %7, %8, %cst_5 {dimension_numbers = #tpu.dot_dimension_numbers<[1], [0], [0], [1], [0, 0, 1, 1], [], []>} : vector<8x128xf32>, vector<128x128xf32>, vector<8x128xf32> -> vector<8x128xf32>
    %c0_6 = arith.constant 0 : index
    %c0_7 = arith.constant 0 : index
    %10 = vector.load %arg4[%c0_6, %c0_7] : memref<1x512xf32, #tpu.memory_space<vmem>>, vector<1x128xf32>
    %11 = vector.broadcast %10 : vector<1x128xf32> to vector<8x128xf32>
    %12 = arith.addf %9, %11 : vector<8x128xf32>
    %13 = math.tanh %12 : vector<8x128xf32>
    %c0_8 = arith.constant 0 : index
    %c128 = arith.constant 128 : index
    %14 = vector.load %arg3[%c0_8, %c128] : memref<128x512xf32, #tpu.memory_space<vmem>>, vector<128x128xf32>
    %cst_9 = arith.constant dense<0.000000e+00> : vector<8x128xf32>
    %15 = tpu.matmul %13, %14, %cst_9 {dimension_numbers = #tpu.dot_dimension_numbers<[1], [0], [0], [1], [0, 0, 1, 1], [], []>} : vector<8x128xf32>, vector<128x128xf32>, vector<8x128xf32> -> vector<8x128xf32>
    %c0_10 = arith.constant 0 : index
    %c128_11 = arith.constant 128 : index
    %16 = vector.load %arg4[%c0_10, %c128_11] : memref<1x512xf32, #tpu.memory_space<vmem>>, vector<1x128xf32>
    %17 = vector.broadcast %16 : vector<1x128xf32> to vector<8x128xf32>
    %18 = arith.addf %15, %17 : vector<8x128xf32>
    %cst_12 = arith.constant 0.000000e+00 : f32
    %19 = vector.broadcast %cst_12 : f32 to vector<8x128xf32>
    %20 = arith.maximumf %18, %19 : vector<8x128xf32>
    %c0_13 = arith.constant 0 : index
    %c256 = arith.constant 256 : index
    %21 = vector.load %arg3[%c0_13, %c256] : memref<128x512xf32, #tpu.memory_space<vmem>>, vector<128x128xf32>
    %cst_14 = arith.constant dense<0.000000e+00> : vector<8x128xf32>
    %22 = tpu.matmul %20, %21, %cst_14 {dimension_numbers = #tpu.dot_dimension_numbers<[1], [0], [0], [1], [0, 0, 1, 1], [], []>} : vector<8x128xf32>, vector<128x128xf32>, vector<8x128xf32> -> vector<8x128xf32>
    %c0_15 = arith.constant 0 : index
    %c256_16 = arith.constant 256 : index
    %23 = vector.load %arg4[%c0_15, %c256_16] : memref<1x512xf32, #tpu.memory_space<vmem>>, vector<1x128xf32>
    %24 = vector.broadcast %23 : vector<1x128xf32> to vector<8x128xf32>
    %25 = arith.addf %22, %24 : vector<8x128xf32>
    %cst_17 = arith.constant 0.000000e+00 : f32
    %26 = vector.broadcast %cst_17 : f32 to vector<8x128xf32>
    %27 = arith.maximumf %25, %26 : vector<8x128xf32>
    %c0_18 = arith.constant 0 : index
    %c384 = arith.constant 384 : index
    %28 = vector.load %arg3[%c0_18, %c384] : memref<128x512xf32, #tpu.memory_space<vmem>>, vector<128x128xf32>
    %cst_19 = arith.constant dense<0.000000e+00> : vector<8x128xf32>
    %29 = tpu.matmul %27, %28, %cst_19 {dimension_numbers = #tpu.dot_dimension_numbers<[1], [0], [0], [1], [0, 0, 1, 1], [], []>} : vector<8x128xf32>, vector<128x128xf32>, vector<8x128xf32> -> vector<8x128xf32>
    %c0_20 = arith.constant 0 : index
    %c384_21 = arith.constant 384 : index
    %30 = vector.load %arg4[%c0_20, %c384_21] : memref<1x512xf32, #tpu.memory_space<vmem>>, vector<1x128xf32>
    %31 = vector.broadcast %30 : vector<1x128xf32> to vector<8x128xf32>
    %32 = arith.addf %29, %31 : vector<8x128xf32>
    %c0_22 = arith.constant 0 : index
    %c0_23 = arith.constant 0 : index
    %33 = vector.load %arg5[%c0_22, %c0_23] : memref<8x128xf32, #tpu.memory_space<vmem>>, vector<8x128xf32>
    tpu.vector_store %arg5[%c0_22, %c0_23], %32 {strides = array<i32>} : memref<8x128xf32, #tpu.memory_space<vmem>>, vector<8x128xf32>,
    return
  }
  func.func @transform_0(%arg0: i32) -> (i32, i32) {
    %c0_i32 = arith.constant 0 : i32
    %c0_i32_0 = arith.constant 0 : i32
    return %arg0, %c0_i32 : i32, i32
  }
  func.func @transform_1(%arg0: i32) -> (i32, i32) {
    %c0_i32 = arith.constant 0 : i32
    %c0_i32_0 = arith.constant 0 : i32
    %c0_i32_1 = arith.constant 0 : i32
    return %c0_i32, %c0_i32_0 : i32, i32
  }
  func.func @transform_2(%arg0: i32) -> (i32, i32) {
    %c0_i32 = arith.constant 0 : i32
    %c0_i32_0 = arith.constant 0 : i32
    %c0_i32_1 = arith.constant 0 : i32
    return %c0_i32, %c0_i32_0 : i32, i32
  }
  func.func @transform_3(%arg0: i32) -> (i32, i32) {
    %c0_i32 = arith.constant 0 : i32
    %c0_i32_0 = arith.constant 0 : i32
    %c0_i32_1 = arith.constant 0 : i32
    return %c0_i32, %c0_i32_0 : i32, i32
  }
  func.func @transform_4(%arg0: i32) -> (i32, i32) {
    %c0_i32 = arith.constant 0 : i32
    %c0_i32_0 = arith.constant 0 : i32
    return %arg0, %c0_i32 : i32, i32
  }
}

</mosaic_0001>

<llo_original>
// kernel: deferral_forward.1
$region0: #{deferral_forward.1}
  #allocation0 [shape = 'u32[]', space=smem, size = 0x4, offset = 0x4, fixed_abs, tag = 'smem constant byte address 0x4 - core index']
  #allocation1 [shape = 'u32[144,128]{1,0:T(1,128)}', space=vmem, size = 0x12000, scoped, tag = 'internal scratch']
  %s0 = inlined_call_operand.vmem [shape: s32[8,1], index: 0, kind: input, shape index: {}]
  %s1 = inlined_call_operand.hbm [shape: f32[64,128], index: 1, kind: input, shape index: {}]
  %s2 = inlined_call_operand.hbm [shape: f32[128,512], index: 2, kind: input, shape index: {}]
  %s3 = inlined_call_operand.vmem [shape: f32[1,512], index: 3, kind: input, shape index: {}]
  %s4 = inlined_call_operand.vmem [shape: f32[8,128], index: 4, kind: output, shape index: {}]
  %s5 = sld [smem:[#allocation0]]
  $region34: #{deferral_forward.1} parent=0
    _
  %s7 = ssub.s32 1, %s5
  %s8 = scalar_select 0, %s7, %s5
  $region1: #{deferral_forward.1} parent=0
    #allocation2 [shape = 'u8[32768]{0}', space=vmem, size = 0x8000, scoped, tag = 'input window, operand 1, single buffered']
    #allocation3 [shape = 's32[1]{0}', space=sflag, size = 0x4, scoped, tag = 'scoped memory for deferral_forward.1']
    #allocation4 [shape = 'u8[262144]{0}', space=vmem, size = 0x40000, scoped, tag = 'input window, operand 2, single buffered']
    #allocation5 [shape = 's32[1]{0}', space=sflag, size = 0x4, scoped, tag = 'scoped memory for deferral_forward.1']
    %9 = vsyncpa [#allocation3], 0
    %10 = vsyncpa [#allocation5], 0
    // Predicated region
    $region2: #{deferral_forward.1} parent=1 // pred_check
      _
    $region3: #{deferral_forward.1} parent=1 // pred_check_branch
      %12 = sbr.rel (0) target = $region5
    $region4: #{deferral_forward.1} parent=1 // pred_region
      _
    $region5: #{deferral_forward.1} parent=1 // pred_fallthru
      _
    // Predicated region
    $region6: #{deferral_forward.1} parent=1 // pred_check
      _
    $region7: #{deferral_forward.1} parent=1 // pred_check_branch
      %14 = sbr.rel (0) target = $region9
    $region8: #{deferral_forward.1} parent=1 // pred_region
      %s16 = ssub.s32 1024, 1024
      %17 = vsyncadd [#allocation3], %s16
      %s18 = sshll.u32 [#allocation2], 4
      %s19 = int_to_ptr.vmem [resolvable:$true] %s18
      %24 = dma.hbm_to_vmem [thread:$0]  %s1, 1024, %s19, [#allocation3], 128, 128, 8
    $region9: #{deferral_forward.1} parent=1 // pred_fallthru
      _
    // Predicated region
    $region10: #{deferral_forward.1} parent=1 // pred_check
      _
    $region11: #{deferral_forward.1} parent=1 // pred_check_branch
      %26 = sbr.rel (0) target = $region13
    $region12: #{deferral_forward.1} parent=1 // pred_region
      %s28 = ssub.s32 8192, 8192
      %29 = vsyncadd [#allocation5], %s28
      %s30 = sshll.u32 [#allocation4], 4
      %s31 = int_to_ptr.vmem [resolvable:$true] %s30
      %36 = dma.hbm_to_vmem [thread:$0]  %s2, 8192, %s31, [#allocation5], 512, 512, 32
    $region13: #{deferral_forward.1} parent=1 // pred_fallthru
      _
    // Predicated region
    $region14: #{deferral_forward.1} parent=1 // pred_check
      _
    $region15: #{deferral_forward.1} parent=1 // pred_check_branch
      %38 = sbr.rel (0) target = $region17
    $region16: #{deferral_forward.1} parent=1 // pred_region
      _
    $region17: #{deferral_forward.1} parent=1 // pred_fallthru
      _
    // Predicated region
    $region18: #{deferral_forward.1} parent=1 // pred_check
      _
    $region19: #{deferral_forward.1} parent=1 // pred_check_branch
      %40 = sbr.rel (0) target = $region21
    $region20: #{deferral_forward.1} parent=1 // pred_region
      %41 = dma.done [#allocation3], 1024
    $region21: #{deferral_forward.1} parent=1 // pred_fallthru
      _
    // Predicated region
    $region22: #{deferral_forward.1} parent=1 // pred_check
      _
    $region23: #{deferral_forward.1} parent=1 // pred_check_branch
      %43 = sbr.rel (0) target = $region25
    $region24: #{deferral_forward.1} parent=1 // pred_region
      %44 = dma.done [#allocation5], 8192
    $region25: #{deferral_forward.1} parent=1 // pred_fallthru
      _
    %v45 = vld [vmem:[%s0] sm:$0xff]
    %v46 = vlaneseq
    %v47 = vand.u32 %v46, 127
    %48 = vset.pattern.permute.xlu0 0
    %49 = vperm.xlu0 %48, %v45
    %v50 = vpop.permute.xlu0 %49
    %vm51 = vcmp.eq.s32.totalorder %v47, %v50
    %v52 = vsel %vm51, 1, 0
    %v53 = vcvt.s32.f32 %v52
    %v54 = vld [vmem:[#allocation2] sm:$0xff]
    %v55 = vld [vmem:[#allocation2 + $0x8] sm:$0xff]
    %v56 = vld [vmem:[#allocation2 + $0x10] sm:$0xff]
    %v57 = vld [vmem:[#allocation2 + $0x18] sm:$0xff]
    %v58 = vld [vmem:[#allocation2 + $0x20] sm:$0xff]
    %v59 = vld [vmem:[#allocation2 + $0x28] sm:$0xff]
    %v60 = vld [vmem:[#allocation2 + $0x30] sm:$0xff]
    %v61 = vld [vmem:[#allocation2 + $0x38] sm:$0xff]
    %vm62 = vcmask 523264
    %v64 = vsel %vm62, %v53, 0
    %66 = vmatprep.subr.mxu0 0.0
    %67 = vmatpush1.msra.mxu0 %v54
    %68 = vmatprep.subr.mxu0 0.0
    %69 = vmatpush1.msra.mxu0 %v55
    %70 = vmatprep.subr.mxu0 0.0
    %71 = vmatpush1.msra.mxu0 %v56
    %72 = vmatprep.subr.mxu0 0.0
    %73 = vmatpush1.msra.mxu0 %v57
    %74 = vmatprep.subr.mxu0 0.0
    %75 = vmatpush1.msra.mxu0 %v58
    %76 = vmatprep.subr.mxu0 0.0
    %77 = vmatpush1.msra.mxu0 %v59
    %78 = vmatprep.subr.mxu0 0.0
    %79 = vmatpush1.msra.mxu0 %v60
    %80 = vmatprep.subr.mxu0 0.0
    %81 = vmatpush1.msra.mxu0 %v61
    %82 = vmatprep.subr.mxu0 0.0
    %83 = vmatpush1.msra.mxu0 0.0
    %84 = vmatprep.subr.mxu0 0.0
    %85 = vmatpush1.msra.mxu0 0.0
    %86 = vmatprep.subr.mxu0 0.0
    %87 = vmatpush1.msra.mxu0 0.0
    %88 = vmatprep.subr.mxu0 0.0
    %89 = vmatpush1.msra.mxu0 0.0
    %90 = vmatprep.subr.mxu0 0.0
    %91 = vmatpush1.msra.mxu0 0.0
    %92 = vmatprep.subr.mxu0 0.0
    %93 = vmatpush1.msra.mxu0 0.0
    %94 = vmatprep.subr.mxu0 0.0
    %95 = vmatpush1.msra.mxu0 0.0
    %96 = vmatprep.subr.mxu0 0.0
    %97 = vmatpush1.msra.mxu0 0.0
    %98 = vmatprep.subr.mxu0 0.0
    %99 = vmatpush1.msra.mxu0 0.0
    %100 = vmatprep.subr.mxu0 0.0
    %101 = vmatpush1.msra.mxu0 0.0
    %102 = vmatprep.subr.mxu0 0.0
    %103 = vmatpush1.msra.mxu0 0.0
    %104 = vmatprep.subr.mxu0 0.0
    %105 = vmatpush1.msra.mxu0 0.0
    %106 = vmatprep.subr.mxu0 0.0
    %107 = vmatpush1.msra.mxu0 0.0
    %108 = vmatprep.subr.mxu0 0.0
    %109 = vmatpush1.msra.mxu0 0.0
    %110 = vmatprep.subr.mxu0 0.0
    %111 = vmatpush1.msra.mxu0 0.0
    %112 = vmatprep.subr.mxu0 0.0
    %113 = vmatpush1.msra.mxu0 0.0
    %114 = vmatprep.subr.mxu0 0.0
    %115 = vmatpush1.msra.mxu0 0.0
    %116 = vmatprep.subr.mxu0 0.0
    %117 = vmatpush1.msra.mxu0 0.0
    %118 = vmatprep.subr.mxu0 0.0
    %119 = vmatpush1.msra.mxu0 0.0
    %120 = vmatprep.subr.mxu0 0.0
    %121 = vmatpush1.msra.mxu0 0.0
    %122 = vmatprep.subr.mxu0 0.0
    %123 = vmatpush1.msra.mxu0 0.0
    %124 = vmatprep.subr.mxu0 0.0
    %125 = vmatpush1.msra.mxu0 0.0
    %126 = vmatprep.subr.mxu0 0.0
    %127 = vmatpush1.msra.mxu0 0.0
    %128 = vmatprep.subr.mxu0 0.0
    %129 = vmatpush1.msra.mxu0 0.0
    %130 = vmatprep.mubr.f32.mxu0 0.0
    %131 = vmatmul.mubr.f32.gmra.mrb[0].mxu0 %v64
    %v132 = vpop.f32.mrb[0].mxu0
    %v133 = vadd.f32 0.0, %v132
    %v134 = vpop.f32.mrb[0].mxu0
    %135 = vdwg.mxu0
    %v136 = vld [vmem:[#allocation4] sm:$0xff]
    %v137 = vld [vmem:[#allocation4 + $0x20] sm:$0xff]
    %v138 = vld [vmem:[#allocation4 + $0x40] sm:$0xff]
    %v139 = vld [vmem:[#allocation4 + $0x60] sm:$0xff]
    %v140 = vld [vmem:[#allocation4 + $0x80] sm:$0xff]
    %v141 = vld [vmem:[#allocation4 + $0xa0] sm:$0xff]
    %v142 = vld [vmem:[#allocation4 + $0xc0] sm:$0xff]
    %v143 = vld [vmem:[#allocation4 + $0xe0] sm:$0xff]
    %v144 = vld [vmem:[#allocation4 + $0x100] sm:$0xff]
    %v145 = vld [vmem:[#allocation4 + $0x120] sm:$0xff]
    %v146 = vld [vmem:[#allocation4 + $0x140] sm:$0xff]
    %v147 = vld [vmem:[#allocation4 + $0x160] sm:$0xff]
    %v148 = vld [vmem:[#allocation4 + $0x180] sm:$0xff]
    %v149 = vld [vmem:[#allocation4 + $0x1a0] sm:$0xff]
    %v150 = vld [vmem:[#allocation4 + $0x1c0] sm:$0xff]
    %v151 = vld [vmem:[#allocation4 + $0x1e0] sm:$0xff]
    %v152 = vld [vmem:[%s3] sm:$0x1]
    %v154 = vlaneseq
    %v155 = vshrl.u32 %v154, 7
    %v156 = vsub.s32 0, %v155
    %v157 = vrot.slane %v152, %v156
    %159 = vmatprep.subr.mxu0 0.0
    %160 = vmatpush1.msra.mxu0 %v136
    %161 = vmatprep.subr.mxu0 0.0
    %162 = vmatpush1.msra.mxu0 %v137
    %163 = vmatprep.subr.mxu0 0.0
    %164 = vmatpush1.msra.mxu0 %v138
    %165 = vmatprep.subr.mxu0 0.0
    %166 = vmatpush1.msra.mxu0 %v139
    %167 = vmatprep.subr.mxu0 0.0
    %168 = vmatpush1.msra.mxu0 %v140
    %169 = vmatprep.subr.mxu0 0.0
    %170 = vmatpush1.msra.mxu0 %v141
    %171 = vmatprep.subr.mxu0 0.0
    %172 = vmatpush1.msra.mxu0 %v142
    %173 = vmatprep.subr.mxu0 0.0
    %174 = vmatpush1.msra.mxu0 %v143
    %175 = vmatprep.subr.mxu0 0.0
    %176 = vmatpush1.msra.mxu0 %v144
    %177 = vmatprep.subr.mxu0 0.0
    %178 = vmatpush1.msra.mxu0 %v145
    %179 = vmatprep.subr.mxu0 0.0
    %180 = vmatpush1.msra.mxu0 %v146
    %181 = vmatprep.subr.mxu0 0.0
    %182 = vmatpush1.msra.mxu0 %v147
    %183 = vmatprep.subr.mxu0 0.0
    %184 = vmatpush1.msra.mxu0 %v148
    %185 = vmatprep.subr.mxu0 0.0
    %186 = vmatpush1.msra.mxu0 %v149
    %187 = vmatprep.subr.mxu0 0.0
    %188 = vmatpush1.msra.mxu0 %v150
    %189 = vmatprep.subr.mxu0 0.0
    %190 = vmatpush1.msra.mxu0 %v151
    %191 = vmatprep.subr.mxu0 0.0
    %192 = vmatpush1.msra.mxu0 0.0
    %193 = vmatprep.subr.mxu0 0.0
    %194 = vmatpush1.msra.mxu0 0.0
    %195 = vmatprep.subr.mxu0 0.0
    %196 = vmatpush1.msra.mxu0 0.0
    %197 = vmatprep.subr.mxu0 0.0
    %198 = vmatpush1.msra.mxu0 0.0
    %199 = vmatprep.subr.mxu0 0.0
    %200 = vmatpush1.msra.mxu0 0.0
    %201 = vmatprep.subr.mxu0 0.0
    %202 = vmatpush1.msra.mxu0 0.0
    %203 = vmatprep.subr.mxu0 0.0
    %204 = vmatpush1.msra.mxu0 0.0
    %205 = vmatprep.subr.mxu0 0.0
    %206 = vmatpush1.msra.mxu0 0.0
    %207 = vmatprep.subr.mxu0 0.0
    %208 = vmatpush1.msra.mxu0 0.0
    %209 = vmatprep.subr.mxu0 0.0
    %210 = vmatpush1.msra.mxu0 0.0
    %211 = vmatprep.subr.mxu0 0.0
    %212 = vmatpush1.msra.mxu0 0.0
    %213 = vmatprep.subr.mxu0 0.0
    %214 = vmatpush1.msra.mxu0 0.0
    %215 = vmatprep.subr.mxu0 0.0
    %216 = vmatpush1.msra.mxu0 0.0
    %217 = vmatprep.subr.mxu0 0.0
    %218 = vmatpush1.msra.mxu0 0.0
    %219 = vmatprep.subr.mxu0 0.0
    %220 = vmatpush1.msra.mxu0 0.0
    %221 = vmatprep.subr.mxu0 0.0
    %222 = vmatpush1.msra.mxu0 0.0
    %223 = vmatprep.mubr.f32.mxu0 0.0
    %224 = vmatmul.mubr.f32.gmra.mrb[0].mxu0 %v133
    %v225 = vpop.f32.mrb[0].mxu0
    %v226 = vadd.f32 %v157, %v225
    %v227 = vpop.f32.mrb[0].mxu0
    %228 = vdwg.mxu0
    %v229 = vtanh.pop %v226
    %v230 = vld [vmem:[#allocation4 + $0x8] sm:$0xff]
    %v231 = vld [vmem:[#allocation4 + $0x28] sm:$0xff]
    %v232 = vld [vmem:[#allocation4 + $0x48] sm:$0xff]
    %v233 = vld [vmem:[#allocation4 + $0x68] sm:$0xff]
    %v234 = vld [vmem:[#allocation4 + $0x88] sm:$0xff]
    %v235 = vld [vmem:[#allocation4 + $0xa8] sm:$0xff]
    %v236 = vld [vmem:[#allocation4 + $0xc8] sm:$0xff]
    %v237 = vld [vmem:[#allocation4 + $0xe8] sm:$0xff]
    %v238 = vld [vmem:[#allocation4 + $0x108] sm:$0xff]
    %v239 = vld [vmem:[#allocation4 + $0x128] sm:$0xff]
    %v240 = vld [vmem:[#allocation4 + $0x148] sm:$0xff]
    %v241 = vld [vmem:[#allocation4 + $0x168] sm:$0xff]
    %v242 = vld [vmem:[#allocation4 + $0x188] sm:$0xff]
    %v243 = vld [vmem:[#allocation4 + $0x1a8] sm:$0xff]
    %v244 = vld [vmem:[#allocation4 + $0x1c8] sm:$0xff]
    %v245 = vld [vmem:[#allocation4 + $0x1e8] sm:$0xff]
    %v246 = vld [vmem:[%s3 + $0x1] sm:$0x1]
    %v248 = vlaneseq
    %v249 = vshrl.u32 %v248, 7
    %v250 = vsub.s32 0, %v249
    %v251 = vrot.slane %v246, %v250
    %253 = vmatprep.subr.mxu0 0.0
    %254 = vmatpush1.msra.mxu0 %v230
    %255 = vmatprep.subr.mxu0 0.0
    %256 = vmatpush1.msra.mxu0 %v231
    %257 = vmatprep.subr.mxu0 0.0
    %258 = vmatpush1.msra.mxu0 %v232
    %259 = vmatprep.subr.mxu0 0.0
    %260 = vmatpush1.msra.mxu0 %v233
    %261 = vmatprep.subr.mxu0 0.0
    %262 = vmatpush1.msra.mxu0 %v234
    %263 = vmatprep.subr.mxu0 0.0
    %264 = vmatpush1.msra.mxu0 %v235
    %265 = vmatprep.subr.mxu0 0.0
    %266 = vmatpush1.msra.mxu0 %v236
    %267 = vmatprep.subr.mxu0 0.0
    %268 = vmatpush1.msra.mxu0 %v237
    %269 = vmatprep.subr.mxu0 0.0
    %270 = vmatpush1.msra.mxu0 %v238
    %271 = vmatprep.subr.mxu0 0.0
    %272 = vmatpush1.msra.mxu0 %v239
    %273 = vmatprep.subr.mxu0 0.0
    %274 = vmatpush1.msra.mxu0 %v240
    %275 = vmatprep.subr.mxu0 0.0
    %276 = vmatpush1.msra.mxu0 %v241
    %277 = vmatprep.subr.mxu0 0.0
    %278 = vmatpush1.msra.mxu0 %v242
    %279 = vmatprep.subr.mxu0 0.0
    %280 = vmatpush1.msra.mxu0 %v243
    %281 = vmatprep.subr.mxu0 0.0
    %282 = vmatpush1.msra.mxu0 %v244
    %283 = vmatprep.subr.mxu0 0.0
    %284 = vmatpush1.msra.mxu0 %v245
    %285 = vmatprep.subr.mxu0 0.0
    %286 = vmatpush1.msra.mxu0 0.0
    %287 = vmatprep.subr.mxu0 0.0
    %288 = vmatpush1.msra.mxu0 0.0
    %289 = vmatprep.subr.mxu0 0.0
    %290 = vmatpush1.msra.mxu0 0.0
    %291 = vmatprep.subr.mxu0 0.0
    %292 = vmatpush1.msra.mxu0 0.0
    %293 = vmatprep.subr.mxu0 0.0
    %294 = vmatpush1.msra.mxu0 0.0
    %295 = vmatprep.subr.mxu0 0.0
    %296 = vmatpush1.msra.mxu0 0.0
    %297 = vmatprep.subr.mxu0 0.0
    %298 = vmatpush1.msra.mxu0 0.0
    %299 = vmatprep.subr.mxu0 0.0
    %300 = vmatpush1.msra.mxu0 0.0
    %301 = vmatprep.subr.mxu0 0.0
    %302 = vmatpush1.msra.mxu0 0.0
    %303 = vmatprep.subr.mxu0 0.0
    %304 = vmatpush1.msra.mxu0 0.0
    %305 = vmatprep.subr.mxu0 0.0
    %306 = vmatpush1.msra.mxu0 0.0
    %307 = vmatprep.subr.mxu0 0.0
    %308 = vmatpush1.msra.mxu0 0.0
    %309 = vmatprep.subr.mxu0 0.0
    %310 = vmatpush1.msra.mxu0 0.0
    %311 = vmatprep.subr.mxu0 0.0
    %312 = vmatpush1.msra.mxu0 0.0
    %313 = vmatprep.subr.mxu0 0.0
    %314 = vmatpush1.msra.mxu0 0.0
    %315 = vmatprep.subr.mxu0 0.0
    %316 = vmatpush1.msra.mxu0 0.0
    %317 = vmatprep.mubr.f32.mxu0 0.0
    %318 = vmatmul.mubr.f32.gmra.mrb[0].mxu0 %v229
    %v319 = vpop.f32.mrb[0].mxu0
    %v320 = vadd.f32 %v251, %v319
    %v321 = vpop.f32.mrb[0].mxu0
    %322 = vdwg.mxu0
    %v323 = vmax.f32 %v320, 0.0
    %v324 = vld [vmem:[#allocation4 + $0x10] sm:$0xff]
    %v325 = vld [vmem:[#allocation4 + $0x30] sm:$0xff]
    %v326 = vld [vmem:[#allocation4 + $0x50] sm:$0xff]
    %v327 = vld [vmem:[#allocation4 + $0x70] sm:$0xff]
    %v328 = vld [vmem:[#allocation4 + $0x90] sm:$0xff]
    %v329 = vld [vmem:[#allocation4 + $0xb0] sm:$0xff]
    %v330 = vld [vmem:[#allocation4 + $0xd0] sm:$0xff]
    %v331 = vld [vmem:[#allocation4 + $0xf0] sm:$0xff]
    %v332 = vld [vmem:[#allocation4 + $0x110] sm:$0xff]
    %v333 = vld [vmem:[#allocation4 + $0x130] sm:$0xff]
    %v334 = vld [vmem:[#allocation4 + $0x150] sm:$0xff]
    %v335 = vld [vmem:[#allocation4 + $0x170] sm:$0xff]
    %v336 = vld [vmem:[#allocation4 + $0x190] sm:$0xff]
    %v337 = vld [vmem:[#allocation4 + $0x1b0] sm:$0xff]
    %v338 = vld [vmem:[#allocation4 + $0x1d0] sm:$0xff]
    %v339 = vld [vmem:[#allocation4 + $0x1f0] sm:$0xff]
    %v340 = vld [vmem:[%s3 + $0x2] sm:$0x1]
    %v342 = vlaneseq
    %v343 = vshrl.u32 %v342, 7
    %v344 = vsub.s32 0, %v343
    %v345 = vrot.slane %v340, %v344
    %347 = vmatprep.subr.mxu0 0.0
    %348 = vmatpush1.msra.mxu0 %v324
    %349 = vmatprep.subr.mxu0 0.0
    %350 = vmatpush1.msra.mxu0 %v325
    %351 = vmatprep.subr.mxu0 0.0
    %352 = vmatpush1.msra.mxu0 %v326
    %353 = vmatprep.subr.mxu0 0.0
    %354 = vmatpush1.msra.mxu0 %v327
    %355 = vmatprep.subr.mxu0 0.0
    %356 = vmatpush1.msra.mxu0 %v328
    %357 = vmatprep.subr.mxu0 0.0
    %358 = vmatpush1.msra.mxu0 %v329
    %359 = vmatprep.subr.mxu0 0.0
    %360 = vmatpush1.msra.mxu0 %v330
    %361 = vmatprep.subr.mxu0 0.0
    %362 = vmatpush1.msra.mxu0 %v331
    %363 = vmatprep.subr.mxu0 0.0
    %364 = vmatpush1.msra.mxu0 %v332
    %365 = vmatprep.subr.mxu0 0.0
    %366 = vmatpush1.msra.mxu0 %v333
    %367 = vmatprep.subr.mxu0 0.0
    %368 = vmatpush1.msra.mxu0 %v334
    %369 = vmatprep.subr.mxu0 0.0
    %370 = vmatpush1.msra.mxu0 %v335
    %371 = vmatprep.subr.mxu0 0.0
    %372 = vmatpush1.msra.mxu0 %v336
    %373 = vmatprep.subr.mxu0 0.0
    %374 = vmatpush1.msra.mxu0 %v337
    %375 = vmatprep.subr.mxu0 0.0
    %376 = vmatpush1.msra.mxu0 %v338
    %377 = vmatprep.subr.mxu0 0.0
    %378 = vmatpush1.msra.mxu0 %v339
    %379 = vmatprep.subr.mxu0 0.0
    %380 = vmatpush1.msra.mxu0 0.0
    %381 = vmatprep.subr.mxu0 0.0
    %382 = vmatpush1.msra.mxu0 0.0
    %383 = vmatprep.subr.mxu0 0.0
    %384 = vmatpush1.msra.mxu0 0.0
    %385 = vmatprep.subr.mxu0 0.0
    %386 = vmatpush1.msra.mxu0 0.0
    %387 = vmatprep.subr.mxu0 0.0
    %388 = vmatpush1.msra.mxu0 0.0
    %389 = vmatprep.subr.mxu0 0.0
    %390 = vmatpush1.msra.mxu0 0.0
    %391 = vmatprep.subr.mxu0 0.0
    %392 = vmatpush1.msra.mxu0 0.0
    %393 = vmatprep.subr.mxu0 0.0
    %394 = vmatpush1.msra.mxu0 0.0
    %395 = vmatprep.subr.mxu0 0.0
    %396 = vmatpush1.msra.mxu0 0.0
    %397 = vmatprep.subr.mxu0 0.0
    %398 = vmatpush1.msra.mxu0 0.0
    %399 = vmatprep.subr.mxu0 0.0
    %400 = vmatpush1.msra.mxu0 0.0
    %401 = vmatprep.subr.mxu0 0.0
    %402 = vmatpush1.msra.mxu0 0.0
    %403 = vmatprep.subr.mxu0 0.0
    %404 = vmatpush1.msra.mxu0 0.0
    %405 = vmatprep.subr.mxu0 0.0
    %406 = vmatpush1.msra.mxu0 0.0
    %407 = vmatprep.subr.mxu0 0.0
    %408 = vmatpush1.msra.mxu0 0.0
    %409 = vmatprep.subr.mxu0 0.0
    %410 = vmatpush1.msra.mxu0 0.0
    %411 = vmatprep.mubr.f32.mxu0 0.0
    %412 = vmatmul.mubr.f32.gmra.mrb[0].mxu0 %v323
    %v413 = vpop.f32.mrb[0].mxu0
    %v414 = vadd.f32 %v345, %v413
    %v415 = vpop.f32.mrb[0].mxu0
    %416 = vdwg.mxu0
    %v417 = vmax.f32 %v414, 0.0
    %v418 = vld [vmem:[#allocation4 + $0x18] sm:$0xff]
    %v419 = vld [vmem:[#allocation4 + $0x38] sm:$0xff]
    %v420 = vld [vmem:[#allocation4 + $0x58] sm:$0xff]
    %v421 = vld [vmem:[#allocation4 + $0x78] sm:$0xff]
    %v422 = vld [vmem:[#allocation4 + $0x98] sm:$0xff]
    %v423 = vld [vmem:[#allocation4 + $0xb8] sm:$0xff]
    %v424 = vld [vmem:[#allocation4 + $0xd8] sm:$0xff]
    %v425 = vld [vmem:[#allocation4 + $0xf8] sm:$0xff]
    %v426 = vld [vmem:[#allocation4 + $0x118] sm:$0xff]
    %v427 = vld [vmem:[#allocation4 + $0x138] sm:$0xff]
    %v428 = vld [vmem:[#allocation4 + $0x158] sm:$0xff]
    %v429 = vld [vmem:[#allocation4 + $0x178] sm:$0xff]
    %v430 = vld [vmem:[#allocation4 + $0x198] sm:$0xff]
    %v431 = vld [vmem:[#allocation4 + $0x1b8] sm:$0xff]
    %v432 = vld [vmem:[#allocation4 + $0x1d8] sm:$0xff]
    %v433 = vld [vmem:[#allocation4 + $0x1f8] sm:$0xff]
    %v434 = vld [vmem:[%s3 + $0x3] sm:$0x1]
    %v436 = vlaneseq
    %v437 = vshrl.u32 %v436, 7
    %v438 = vsub.s32 0, %v437
    %v439 = vrot.slane %v434, %v438
    %441 = vmatprep.subr.mxu0 0.0
    %442 = vmatpush1.msra.mxu0 %v418
    %443 = vmatprep.subr.mxu0 0.0
    %444 = vmatpush1.msra.mxu0 %v419
    %445 = vmatprep.subr.mxu0 0.0
    %446 = vmatpush1.msra.mxu0 %v420
    %447 = vmatprep.subr.mxu0 0.0
    %448 = vmatpush1.msra.mxu0 %v421
    %449 = vmatprep.subr.mxu0 0.0
    %450 = vmatpush1.msra.mxu0 %v422
    %451 = vmatprep.subr.mxu0 0.0
    %452 = vmatpush1.msra.mxu0 %v423
    %453 = vmatprep.subr.mxu0 0.0
    %454 = vmatpush1.msra.mxu0 %v424
    %455 = vmatprep.subr.mxu0 0.0
    %456 = vmatpush1.msra.mxu0 %v425
    %457 = vmatprep.subr.mxu0 0.0
    %458 = vmatpush1.msra.mxu0 %v426
    %459 = vmatprep.subr.mxu0 0.0
    %460 = vmatpush1.msra.mxu0 %v427
    %461 = vmatprep.subr.mxu0 0.0
    %462 = vmatpush1.msra.mxu0 %v428
    %463 = vmatprep.subr.mxu0 0.0
    %464 = vmatpush1.msra.mxu0 %v429
    %465 = vmatprep.subr.mxu0 0.0
    %466 = vmatpush1.msra.mxu0 %v430
    %467 = vmatprep.subr.mxu0 0.0
    %468 = vmatpush1.msra.mxu0 %v431
    %469 = vmatprep.subr.mxu0 0.0
    %470 = vmatpush1.msra.mxu0 %v432
    %471 = vmatprep.subr.mxu0 0.0
    %472 = vmatpush1.msra.mxu0 %v433
    %473 = vmatprep.subr.mxu0 0.0
    %474 = vmatpush1.msra.mxu0 0.0
    %475 = vmatprep.subr.mxu0 0.0
    %476 = vmatpush1.msra.mxu0 0.0
    %477 = vmatprep.subr.mxu0 0.0
    %478 = vmatpush1.msra.mxu0 0.0
    %479 = vmatprep.subr.mxu0 0.0
    %480 = vmatpush1.msra.mxu0 0.0
    %481 = vmatprep.subr.mxu0 0.0
    %482 = vmatpush1.msra.mxu0 0.0
    %483 = vmatprep.subr.mxu0 0.0
    %484 = vmatpush1.msra.mxu0 0.0
    %485 = vmatprep.subr.mxu0 0.0
    %486 = vmatpush1.msra.mxu0 0.0
    %487 = vmatprep.subr.mxu0 0.0
    %488 = vmatpush1.msra.mxu0 0.0
    %489 = vmatprep.subr.mxu0 0.0
    %490 = vmatpush1.msra.mxu0 0.0
    %491 = vmatprep.subr.mxu0 0.0
    %492 = vmatpush1.msra.mxu0 0.0
    %493 = vmatprep.subr.mxu0 0.0
    %494 = vmatpush1.msra.mxu0 0.0
    %495 = vmatprep.subr.mxu0 0.0
    %496 = vmatpush1.msra.mxu0 0.0
    %497 = vmatprep.subr.mxu0 0.0
    %498 = vmatpush1.msra.mxu0 0.0
    %499 = vmatprep.subr.mxu0 0.0
    %500 = vmatpush1.msra.mxu0 0.0
    %501 = vmatprep.subr.mxu0 0.0
    %502 = vmatpush1.msra.mxu0 0.0
    %503 = vmatprep.subr.mxu0 0.0
    %504 = vmatpush1.msra.mxu0 0.0
    %505 = vmatprep.mubr.f32.mxu0 0.0
    %506 = vmatmul.mubr.f32.gmra.mrb[0].mxu0 %v417
    %v507 = vpop.f32.mrb[0].mxu0
    %v508 = vadd.f32 %v439, %v507
    %v509 = vpop.f32.mrb[0].mxu0
    %510 = vdwg.mxu0
    %511 = vst [vmem:[%s4] sm:$0xff] %v508
    // Predicated region
    $region26: #{deferral_forward.1} parent=1 // pred_check
      _
    $region27: #{deferral_forward.1} parent=1 // pred_check_branch
      %513 = sbr.rel (0) target = $region29
    $region28: #{deferral_forward.1} parent=1 // pred_region
      _
    $region29: #{deferral_forward.1} parent=1 // pred_fallthru
      _
    // Predicated region
    $region30: #{deferral_forward.1} parent=1 // pred_check
      _
    $region31: #{deferral_forward.1} parent=1 // pred_check_branch
      %515 = sbr.rel (0) target = $region33
    $region32: #{deferral_forward.1} parent=1 // pred_region
      _
    $region33: #{deferral_forward.1} parent=1 // pred_fallthru
      _
    %516 = vsyncpa [#allocation3], 1
    %517 = vsyncpa [#allocation5], 1

</llo_original>
